<compile_context>
chip_gen: v7x
topology: tpu7x:2x2x1
jax: 0.10.0
libtpu: 0.0.40
codegen_flags: <defaults>
</compile_context>

<pallas_src>
import jax
import jax.numpy as jnp
from jax.experimental import pallas as pl
from jax.experimental.pallas import tpu as pltpu


def _make_kernel(n_tokens_per_image, token_tile):
    inv_n = 1.0 / float(n_tokens_per_image)
    eps = 1e-5
    f32 = jnp.float32
    bf16 = jnp.bfloat16
    groups = token_tile // 8

    def kernel(patches_ref, wp_ref, w1_ref, b1_ref, w2_ref, wn_ref, bn_ref,
               vec_ref, out_ref, acc_ref):
        t = pl.program_id(1)

        # packed (8, D) slab of per-feature f32 vectors (one resident DMA).
        bp    = vec_ref[0:1, :]
        g1    = vec_ref[1:2, :]
        beta1 = vec_ref[2:3, :]
        b2    = vec_ref[3:4, :]
        g2    = vec_ref[4:5, :]
        beta2 = vec_ref[5:6, :]

        @pl.when(t == 0)
        def _init():
            acc_ref[...] = jnp.zeros_like(acc_ref)

        # --- backbone: patch embedding (Conv2d k=s=P as matmul on im2col rows) ---
        # bf16 operands, f32 accumulation on the MXU.
        x = jnp.dot(patches_ref[...], wp_ref[...], preferred_element_type=f32) + bp

        # --- backbone: pre-LN MLP (GELU) residual block (elementwise math in f32) ---
        mu = jnp.mean(x, axis=-1, keepdims=True)
        var = jnp.mean(jnp.square(x - mu), axis=-1, keepdims=True)
        xn = (x - mu) * jax.lax.rsqrt(var + eps) * g1 + beta1
        h = jnp.dot(xn.astype(bf16), w1_ref[...], preferred_element_type=f32) \
            + b1_ref[...]
        h = jax.nn.gelu(h, approximate=True)
        x = x + jnp.dot(h.astype(bf16), w2_ref[...], preferred_element_type=f32) + b2

        # --- backbone: final LayerNorm ---
        mu2 = jnp.mean(x, axis=-1, keepdims=True)
        var2 = jnp.mean(jnp.square(x - mu2), axis=-1, keepdims=True)
        x = (x - mu2) * jax.lax.rsqrt(var2 + eps) * g2 + beta2

        # --- pooler: sublane-aligned partial sums (pure VPU vreg adds) ---
        acc_ref[...] += x.reshape(groups, 8, x.shape[-1]).sum(axis=0)

        # --- finalize (last token tile of this image): collapse sublanes once,
        #     apply 1/N, and fuse the neck matmul + bias; pooled never leaves VMEM ---
        @pl.when(t == pl.num_programs(1) - 1)
        def _finalize():
            pooled = jnp.sum(acc_ref[...], axis=0, keepdims=True) * inv_n   # (1, D)
            out = jnp.dot(pooled.astype(bf16), wn_ref[...],
                          preferred_element_type=f32) + bn_ref[...]         # (1, E)
            # broadcast to the (8, E) slab so the store is an unmasked full-lane vst.
            out_ref[0] = jnp.broadcast_to(out, out_ref.shape[1:]).astype(out_ref.dtype)

    return kernel


def init_params(key, *, C=4, P=4, D=128, hidden=256, E=128):
    ks = jax.random.split(key, 12)
    s = 0.02
    in_dim = C * P * P
    n = lambda k, shape: jax.random.normal(k, shape, jnp.float32)
    return {
        "patch_size": P,
        "wp": s * n(ks[0], (in_dim, D)),
        "bp": 0.1 * n(ks[1], (1, D)),
        "g1": 1.0 + 0.1 * n(ks[2], (1, D)),
        "beta1": 0.1 * n(ks[3], (1, D)),
        "w1": s * n(ks[4], (D, hidden)),
        "b1": 0.1 * n(ks[5], (1, hidden)),
        "w2": s * n(ks[6], (hidden, D)),
        "b2": 0.1 * n(ks[7], (1, D)),
        "g2": 1.0 + 0.1 * n(ks[8], (1, D)),
        "beta2": 0.1 * n(ks[9], (1, D)),
        "wn": s * n(ks[10], (D, E)),
        "bn": 0.1 * n(ks[11], (1, E)),
    }


def vision_encoder(imgs, params, *, token_tile=None):
    """imgs: (B, C, H, W) float32 (NCHW, like PyTorch). Returns (B, embed_dim)."""
    B, C, H, W = imgs.shape
    P = params["patch_size"]
    D = params["wp"].shape[1]
    hidden = params["w1"].shape[1]
    E = params["wn"].shape[1]
    nH, nW = H // P, W // P
    N = nH * nW
    in_dim = C * P * P
    bf16 = jnp.bfloat16

    if token_tile is None:
        # largest tile <= 1024 that divides N (multiples of 256 preferred at real N).
        for cand in (1024, 512, 256, 128, 64, 32, 16, 8):
            if cand <= N and N % cand == 0:
                token_tile = cand
                break
    assert token_tile is not None and N % token_tile == 0 and token_tile % 8 == 0
    t_tiles = N // token_tile

    # im2col: (B, C, H, W) -> (B*N, C*P*P); patch flattened (C, P, P) like Conv2d.
    # No lane padding: the K dim stays in_dim and the patch/wp blocks use the full dim.
    patches = (imgs.reshape(B, C, nH, P, nW, P)
                   .transpose(0, 2, 4, 1, 3, 5)
                   .reshape(B * N, in_dim)
                   .astype(bf16))

    # bf16 matmul operands (f32 master weights kept in params).
    wp = params["wp"].astype(bf16)
    w1 = params["w1"].astype(bf16)
    w2 = params["w2"].astype(bf16)
    wn = params["wn"].astype(bf16)
    b1 = params["b1"]
    bn = params["bn"]

    # Pack the six (1, D)-sized f32 vectors into one (8, D) slab (single resident DMA).
    vecs = jnp.concatenate(
        [params["bp"], params["g1"], params["beta1"], params["b2"],
         params["g2"], params["beta2"], jnp.zeros((2, D), jnp.float32)], axis=0)

    kernel = _make_kernel(N, token_tile)
    resident = lambda b, t: (0, 0)  # constant block index -> stays in VMEM

    out3 = pl.pallas_call(
        kernel,
        out_shape=jax.ShapeDtypeStruct((B, 8, E), jnp.float32),
        grid_spec=pltpu.PrefetchScalarGridSpec(
            num_scalar_prefetch=0,
            grid=(B, t_tiles),
            in_specs=[
                pl.BlockSpec((token_tile, in_dim), lambda b, t: (b * t_tiles + t, 0)),
                pl.BlockSpec((in_dim, D), resident),
                pl.BlockSpec((D, hidden), resident),
                pl.BlockSpec((1, hidden), resident),
                pl.BlockSpec((hidden, D), resident),
                pl.BlockSpec((D, E), resident),
                pl.BlockSpec((1, E), resident),
                pl.BlockSpec((8, D), resident),
            ],
            out_specs=pl.BlockSpec((1, 8, E), lambda b, t: (b, 0, 0)),
            scratch_shapes=[pltpu.VMEM((8, D), jnp.float32)],
        ),
        compiler_params=pltpu.CompilerParams(
            dimension_semantics=("parallel", "arbitrary"),
            vmem_limit_bytes=32 * 1024 * 1024,
        ),
    )(patches, wp, w1, b1, w2, wn, bn, vecs)

    return out3[:, 0, :]


def _reference(imgs, params):
    """Pure-JAX reference using the same bf16-operand / f32-accumulate math."""
    B, C, H, W = imgs.shape
    P = params["patch_size"]
    nH, nW = H // P, W // P
    N = nH * nW
    eps = 1e-5
    f32, bf16 = jnp.float32, jnp.bfloat16
    patches = (imgs.reshape(B, C, nH, P, nW, P)
                   .transpose(0, 2, 4, 1, 3, 5)
                   .reshape(B * N, C * P * P).astype(bf16))
    x = jnp.dot(patches, params["wp"].astype(bf16),
                preferred_element_type=f32) + params["bp"]
    mu = jnp.mean(x, -1, keepdims=True)
    var = jnp.mean((x - mu) ** 2, -1, keepdims=True)
    xn = (x - mu) * jax.lax.rsqrt(var + eps) * params["g1"] + params["beta1"]
    h = jnp.dot(xn.astype(bf16), params["w1"].astype(bf16),
                preferred_element_type=f32) + params["b1"]
    h = jax.nn.gelu(h, approximate=True)
    x = x + jnp.dot(h.astype(bf16), params["w2"].astype(bf16),
                    preferred_element_type=f32) + params["b2"]
    mu2 = jnp.mean(x, -1, keepdims=True)
    var2 = jnp.mean((x - mu2) ** 2, -1, keepdims=True)
    x = (x - mu2) * jax.lax.rsqrt(var2 + eps) * params["g2"] + params["beta2"]
    pooled = x.reshape(B, N, -1).mean(axis=1)
    return jnp.dot(pooled.astype(bf16), params["wn"].astype(bf16),
                   preferred_element_type=f32) + params["bn"]


if __name__ == "__main__":
    key = jax.random.PRNGKey(0)
    k_img, k_par = jax.random.split(key)
    imgs = jax.random.normal(k_img, (2, 4, 32, 32), jnp.float32)  # (B, C, H, W)
    params = init_params(k_par, C=4, P=4, D=128, hidden=256, E=128)

    # token_tile=32 -> grid (2 images, 2 token-tiles) exercises the pooling accumulator.
    out = vision_encoder(imgs, params, token_tile=32)
    out = jax.block_until_ready(out)

    ref = _reference(imgs, params)
    assert out.shape == (2, 128), out.shape
    err = float(jnp.max(jnp.abs(out - ref)))
    assert jnp.allclose(out, ref, atol=2e-2, rtol=2e-2), err
    print("KERNEL_OK")
</pallas_src>

<mosaic_0001>
module attributes {stable_mosaic.version = 11 : i64} {
  func.func @kernel(%arg0: i32, %arg1: i32, %arg2: memref<32x64xbf16, #tpu.memory_space<vmem>>, %arg3: memref<64x128xbf16, #tpu.memory_space<vmem>>, %arg4: memref<128x256xbf16, #tpu.memory_space<vmem>>, %arg5: memref<1x256xf32, #tpu.memory_space<vmem>>, %arg6: memref<256x128xbf16, #tpu.memory_space<vmem>>, %arg7: memref<128x128xbf16, #tpu.memory_space<vmem>>, %arg8: memref<1x128xf32, #tpu.memory_space<vmem>>, %arg9: memref<8x128xf32, #tpu.memory_space<vmem>>, %arg10: memref<1x8x128xf32, #tpu.memory_space<vmem>>, %arg11: memref<8x128xf32, #tpu.memory_space<vmem>>) attributes {dimension_semantics = [#tpu.dimension_semantics<parallel>, #tpu.dimension_semantics<arbitrary>], iteration_bounds = array<i64: 2, 2>, scalar_prefetch = 0 : i64, scratch_operands = 1 : i64, tpu.core_type = #tpu.core_type<tc>, window_params = [{transform_indices = @transform_0, window_bounds = array<i64: 32, 64>}, {pipeline_mode = #tpu.pipeline_mode<synchronous>, transform_indices = @transform_1, window_bounds = array<i64: 64, 128>}, {pipeline_mode = #tpu.pipeline_mode<synchronous>, transform_indices = @transform_2, window_bounds = array<i64: 128, 256>}, {pipeline_mode = #tpu.pipeline_mode<synchronous>, transform_indices = @transform_3, window_bounds = array<i64: 1, 256>}, {pipeline_mode = #tpu.pipeline_mode<synchronous>, transform_indices = @transform_4, window_bounds = array<i64: 256, 128>}, {pipeline_mode = #tpu.pipeline_mode<synchronous>, transform_indices = @transform_5, window_bounds = array<i64: 128, 128>}, {pipeline_mode = #tpu.pipeline_mode<synchronous>, transform_indices = @transform_6, window_bounds = array<i64: 1, 128>}, {pipeline_mode = #tpu.pipeline_mode<synchronous>, transform_indices = @transform_7, window_bounds = array<i64: 8, 128>}, {transform_indices = @transform_8, window_bounds = array<i64: 1, 8, 128>}]} {
    %c0 = arith.constant 0 : index
    %c0_0 = arith.constant 0 : index
    %0 = vector.load %arg9[%c0, %c0_0] : memref<8x128xf32, #tpu.memory_space<vmem>>, vector<1x128xf32>
    %c1 = arith.constant 1 : index
    %c0_1 = arith.constant 0 : index
    %1 = vector.load %arg9[%c1, %c0_1] : memref<8x128xf32, #tpu.memory_space<vmem>>, vector<1x128xf32>
    %c2 = arith.constant 2 : index
    %c0_2 = arith.constant 0 : index
    %2 = vector.load %arg9[%c2, %c0_2] : memref<8x128xf32, #tpu.memory_space<vmem>>, vector<1x128xf32>
    %c3 = arith.constant 3 : index
    %c0_3 = arith.constant 0 : index
    %3 = vector.load %arg9[%c3, %c0_3] : memref<8x128xf32, #tpu.memory_space<vmem>>, vector<1x128xf32>
    %c4 = arith.constant 4 : index
    %c0_4 = arith.constant 0 : index
    %4 = vector.load %arg9[%c4, %c0_4] : memref<8x128xf32, #tpu.memory_space<vmem>>, vector<1x128xf32>
    %c5 = arith.constant 5 : index
    %c0_5 = arith.constant 0 : index
    %5 = vector.load %arg9[%c5, %c0_5] : memref<8x128xf32, #tpu.memory_space<vmem>>, vector<1x128xf32>
    %c0_i32 = arith.constant 0 : i32
    %6 = arith.cmpi eq, %arg1, %c0_i32 : i32
    %7 = arith.extui %6 : i1 to i32
    %c0_i32_6 = arith.constant 0 : i32
    %8 = arith.cmpi ne, %7, %c0_i32_6 : i32
    scf.if %8 {
      %cst_39 = arith.constant 0.000000e+00 : f32
      %91 = vector.broadcast %cst_39 : f32 to vector<8x128xf32>
      %c0_40 = arith.constant 0 : index
      %c0_41 = arith.constant 0 : index
      %92 = vector.load %arg11[%c0_40, %c0_41] : memref<8x128xf32, #tpu.memory_space<vmem>>, vector<8x128xf32>
      tpu.vector_store %arg11[%c0_40, %c0_41], %91 {strides = array<i32>} : memref<8x128xf32, #tpu.memory_space<vmem>>, vector<8x128xf32>,
    } else {
    }
    %c0_7 = arith.constant 0 : index
    %c0_8 = arith.constant 0 : index
    %9 = vector.load %arg2[%c0_7, %c0_8] : memref<32x64xbf16, #tpu.memory_space<vmem>>, vector<32x64xbf16>
    %c0_9 = arith.constant 0 : index
    %c0_10 = arith.constant 0 : index
    %10 = vector.load %arg3[%c0_9, %c0_10] : memref<64x128xbf16, #tpu.memory_space<vmem>>, vector<64x128xbf16>
    %cst = arith.constant dense<0.000000e+00> : vector<32x128xf32>
    %11 = tpu.matmul %9, %10, %cst {dimension_numbers = #tpu.dot_dimension_numbers<[1], [0], [0], [1], [0, 0, 1, 1], [], []>} : vector<32x64xbf16>, vector<64x128xbf16>, vector<32x128xf32> -> vector<32x128xf32>
    %12 = vector.broadcast %0 : vector<1x128xf32> to vector<32x128xf32>
    %13 = arith.addf %11, %12 : vector<32x128xf32>
    %cst_11 = arith.constant dense<0.000000e+00> : vector<32xf32>
    %14 = vector.multi_reduction <add>, %13, %cst_11 [1] : vector<32x128xf32> to vector<32xf32>
    %15 = vector.shape_cast %14 : vector<32xf32> to vector<32x1xf32>
    %cst_12 = arith.constant 1.280000e+02 : f32
    %16 = vector.broadcast %cst_12 : f32 to vector<32x1xf32>
    %17 = arith.divf %15, %16 : vector<32x1xf32>
    %18 = vector.broadcast %17 : vector<32x1xf32> to vector<32x128xf32>
    %19 = arith.subf %13, %18 : vector<32x128xf32>
    %20 = arith.mulf %19, %19 : vector<32x128xf32>
    %cst_13 = arith.constant dense<0.000000e+00> : vector<32xf32>
    %21 = vector.multi_reduction <add>, %20, %cst_13 [1] : vector<32x128xf32> to vector<32xf32>
    %22 = vector.shape_cast %21 : vector<32xf32> to vector<32x1xf32>
    %cst_14 = arith.constant 1.280000e+02 : f32
    %23 = vector.broadcast %cst_14 : f32 to vector<32x1xf32>
    %24 = arith.divf %22, %23 : vector<32x1xf32>
    %25 = vector.broadcast %17 : vector<32x1xf32> to vector<32x128xf32>
    %26 = arith.subf %13, %25 : vector<32x128xf32>
    %cst_15 = arith.constant 9.99999974E-6 : f32
    %27 = vector.broadcast %cst_15 : f32 to vector<32x1xf32>
    %28 = arith.addf %24, %27 : vector<32x1xf32>
    %29 = math.rsqrt %28 : vector<32x1xf32>
    %30 = vector.broadcast %29 : vector<32x1xf32> to vector<32x128xf32>
    %31 = arith.mulf %26, %30 : vector<32x128xf32>
    %32 = vector.broadcast %1 : vector<1x128xf32> to vector<32x128xf32>
    %33 = arith.mulf %31, %32 : vector<32x128xf32>
    %34 = vector.broadcast %2 : vector<1x128xf32> to vector<32x128xf32>
    %35 = arith.addf %33, %34 : vector<32x128xf32>
    %36 = arith.truncf %35 : vector<32x128xf32> to vector<32x128xbf16>
    %c0_16 = arith.constant 0 : index
    %c0_17 = arith.constant 0 : index
    %37 = vector.load %arg4[%c0_16, %c0_17] : memref<128x256xbf16, #tpu.memory_space<vmem>>, vector<128x256xbf16>
    %cst_18 = arith.constant dense<0.000000e+00> : vector<32x256xf32>
    %38 = tpu.matmul %36, %37, %cst_18 {dimension_numbers = #tpu.dot_dimension_numbers<[1], [0], [0], [1], [0, 0, 1, 1], [], []>} : vector<32x128xbf16>, vector<128x256xbf16>, vector<32x256xf32> -> vector<32x256xf32>
    %c0_19 = arith.constant 0 : index
    %c0_20 = arith.constant 0 : index
    %39 = vector.load %arg5[%c0_19, %c0_20] : memref<1x256xf32, #tpu.memory_space<vmem>>, vector<1x256xf32>
    %40 = vector.broadcast %39 : vector<1x256xf32> to vector<32x256xf32>
    %41 = arith.addf %38, %40 : vector<32x256xf32>
    %42 = arith.mulf %41, %41 : vector<32x256xf32>
    %43 = arith.mulf %41, %42 : vector<32x256xf32>
    %cst_21 = arith.constant 4.471500e-02 : f32
    %44 = vector.broadcast %cst_21 : f32 to vector<32x256xf32>
    %45 = arith.mulf %44, %43 : vector<32x256xf32>
    %46 = arith.addf %41, %45 : vector<32x256xf32>
    %cst_22 = arith.constant 0.797884583 : f32
    %47 = vector.broadcast %cst_22 : f32 to vector<32x256xf32>
    %48 = arith.mulf %47, %46 : vector<32x256xf32>
    %49 = math.tanh %48 : vector<32x256xf32>
    %cst_23 = arith.constant 1.000000e+00 : f32
    %50 = vector.broadcast %cst_23 : f32 to vector<32x256xf32>
    %51 = arith.addf %50, %49 : vector<32x256xf32>
    %cst_24 = arith.constant 5.000000e-01 : f32
    %52 = vector.broadcast %cst_24 : f32 to vector<32x256xf32>
    %53 = arith.mulf %52, %51 : vector<32x256xf32>
    %54 = arith.mulf %41, %53 : vector<32x256xf32>
    %55 = arith.truncf %54 : vector<32x256xf32> to vector<32x256xbf16>
    %c0_25 = arith.constant 0 : index
    %c0_26 = arith.constant 0 : index
    %56 = vector.load %arg6[%c0_25, %c0_26] : memref<256x128xbf16, #tpu.memory_space<vmem>>, vector<256x128xbf16>
    %cst_27 = arith.constant dense<0.000000e+00> : vector<32x128xf32>
    %57 = tpu.matmul %55, %56, %cst_27 {dimension_numbers = #tpu.dot_dimension_numbers<[1], [0], [0], [1], [0, 0, 1, 1], [], []>} : vector<32x256xbf16>, vector<256x128xbf16>, vector<32x128xf32> -> vector<32x128xf32>
    %58 = arith.addf %13, %57 : vector<32x128xf32>
    %59 = vector.broadcast %3 : vector<1x128xf32> to vector<32x128xf32>
    %60 = arith.addf %58, %59 : vector<32x128xf32>
    %cst_28 = arith.constant dense<0.000000e+00> : vector<32xf32>
    %61 = vector.multi_reduction <add>, %60, %cst_28 [1] : vector<32x128xf32> to vector<32xf32>
    %62 = vector.shape_cast %61 : vector<32xf32> to vector<32x1xf32>
    %cst_29 = arith.constant 1.280000e+02 : f32
    %63 = vector.broadcast %cst_29 : f32 to vector<32x1xf32>
    %64 = arith.divf %62, %63 : vector<32x1xf32>
    %65 = vector.broadcast %64 : vector<32x1xf32> to vector<32x128xf32>
    %66 = arith.subf %60, %65 : vector<32x128xf32>
    %67 = arith.mulf %66, %66 : vector<32x128xf32>
    %cst_30 = arith.constant dense<0.000000e+00> : vector<32xf32>
    %68 = vector.multi_reduction <add>, %67, %cst_30 [1] : vector<32x128xf32> to vector<32xf32>
    %69 = vector.shape_cast %68 : vector<32xf32> to vector<32x1xf32>
    %cst_31 = arith.constant 1.280000e+02 : f32
    %70 = vector.broadcast %cst_31 : f32 to vector<32x1xf32>
    %71 = arith.divf %69, %70 : vector<32x1xf32>
    %72 = vector.broadcast %64 : vector<32x1xf32> to vector<32x128xf32>
    %73 = arith.subf %60, %72 : vector<32x128xf32>
    %cst_32 = arith.constant 9.99999974E-6 : f32
    %74 = vector.broadcast %cst_32 : f32 to vector<32x1xf32>
    %75 = arith.addf %71, %74 : vector<32x1xf32>
    %76 = math.rsqrt %75 : vector<32x1xf32>
    %77 = vector.broadcast %76 : vector<32x1xf32> to vector<32x128xf32>
    %78 = arith.mulf %73, %77 : vector<32x128xf32>
    %79 = vector.broadcast %4 : vector<1x128xf32> to vector<32x128xf32>
    %80 = arith.mulf %78, %79 : vector<32x128xf32>
    %81 = vector.broadcast %5 : vector<1x128xf32> to vector<32x128xf32>
    %82 = arith.addf %80, %81 : vector<32x128xf32>
    %c0_33 = arith.constant 0 : index
    %c0_34 = arith.constant 0 : index
    %83 = vector.load %arg11[%c0_33, %c0_34] : memref<8x128xf32, #tpu.memory_space<vmem>>, vector<8x128xf32>
    %84 = vector.shape_cast %82 : vector<32x128xf32> to vector<4x8x128xf32>
    %cst_35 = arith.constant dense<0.000000e+00> : vector<8x128xf32>
    %85 = vector.multi_reduction <add>, %84, %cst_35 [0] : vector<4x8x128xf32> to vector<8x128xf32>
    %86 = arith.addf %83, %85 : vector<8x128xf32>
    %c0_36 = arith.constant 0 : index
    %c0_37 = arith.constant 0 : index
    %87 = vector.load %arg11[%c0_36, %c0_37] : memref<8x128xf32, #tpu.memory_space<vmem>>, vector<8x128xf32>
    tpu.vector_store %arg11[%c0_36, %c0_37], %86 {strides = array<i32>} : memref<8x128xf32, #tpu.memory_space<vmem>>, vector<8x128xf32>,
    %c1_i32 = arith.constant 1 : i32
    %88 = arith.cmpi eq, %arg1, %c1_i32 : i32
    %89 = arith.extui %88 : i1 to i32
    %c0_i32_38 = arith.constant 0 : i32
    %90 = arith.cmpi ne, %89, %c0_i32_38 : i32
    scf.if %90 {
      %c0_39 = arith.constant 0 : index
      %c0_40 = arith.constant 0 : index
      %91 = vector.load %arg11[%c0_39, %c0_40] : memref<8x128xf32, #tpu.memory_space<vmem>>, vector<8x128xf32>
      %cst_41 = arith.constant dense<0.000000e+00> : vector<128xf32>
      %92 = vector.multi_reduction <add>, %91, %cst_41 [0] : vector<8x128xf32> to vector<128xf32>
      %93 = vector.shape_cast %92 : vector<128xf32> to vector<1x128xf32>
      %cst_42 = arith.constant 1.562500e-02 : f32
      %94 = vector.broadcast %cst_42 : f32 to vector<1x128xf32>
      %95 = arith.mulf %93, %94 : vector<1x128xf32>
      %96 = arith.truncf %95 : vector<1x128xf32> to vector<1x128xbf16>
      %c0_43 = arith.constant 0 : index
      %c0_44 = arith.constant 0 : index
      %97 = vector.load %arg7[%c0_43, %c0_44] : memref<128x128xbf16, #tpu.memory_space<vmem>>, vector<128x128xbf16>
      %cst_45 = arith.constant dense<0.000000e+00> : vector<1x128xf32>
      %98 = tpu.matmul %96, %97, %cst_45 {dimension_numbers = #tpu.dot_dimension_numbers<[1], [0], [0], [1], [0, 0, 1, 1], [], []>} : vector<1x128xbf16>, vector<128x128xbf16>, vector<1x128xf32> -> vector<1x128xf32>
      %c0_46 = arith.constant 0 : index
      %c0_47 = arith.constant 0 : index
      %99 = vector.load %arg8[%c0_46, %c0_47] : memref<1x128xf32, #tpu.memory_space<vmem>>, vector<1x128xf32>
      %100 = arith.addf %98, %99 : vector<1x128xf32>
      %101 = vector.shape_cast %100 : vector<1x128xf32> to vector<1x128xf32>
      %102 = vector.broadcast %101 : vector<1x128xf32> to vector<8x128xf32>
      %c0_48 = arith.constant 0 : index
      %c0_49 = arith.constant 0 : index
      %c0_50 = arith.constant 0 : index
      %103 = vector.load %arg10[%c0_48, %c0_49, %c0_50] : memref<1x8x128xf32, #tpu.memory_space<vmem>>, vector<1x8x128xf32>
      %104 = vector.shape_cast %103 : vector<1x8x128xf32> to vector<8x128xf32>
      %105 = vector.shape_cast %102 : vector<8x128xf32> to vector<1x8x128xf32>
      tpu.vector_store %arg10[%c0_48, %c0_49, %c0_50], %105 {strides = array<i32>} : memref<1x8x128xf32, #tpu.memory_space<vmem>>, vector<1x8x128xf32>,
    } else {
    }
    return
  }
  func.func @transform_0(%arg0: i32, %arg1: i32) -> (i32, i32) {
    %c2_i32 = arith.constant 2 : i32
    %0 = arith.muli %arg0, %c2_i32 : i32
    %1 = arith.addi %0, %arg1 : i32
    %c0_i32 = arith.constant 0 : i32
    %c0_i32_0 = arith.constant 0 : i32
    return %1, %c0_i32 : i32, i32
  }
  func.func @transform_1(%arg0: i32, %arg1: i32) -> (i32, i32) {
    %c0_i32 = arith.constant 0 : i32
    %c0_i32_0 = arith.constant 0 : i32
    %c0_i32_1 = arith.constant 0 : i32
    return %c0_i32, %c0_i32_0 : i32, i32
  }
  func.func @transform_2(%arg0: i32, %arg1: i32) -> (i32, i32) {
    %c0_i32 = arith.constant 0 : i32
    %c0_i32_0 = arith.constant 0 : i32
    %c0_i32_1 = arith.constant 0 : i32
    return %c0_i32, %c0_i32_0 : i32, i32
  }
  func.func @transform_3(%arg0: i32, %arg1: i32) -> (i32, i32) {
    %c0_i32 = arith.constant 0 : i32
    %c0_i32_0 = arith.constant 0 : i32
    %c0_i32_1 = arith.constant 0 : i32
    return %c0_i32, %c0_i32_0 : i32, i32
  }
  func.func @transform_4(%arg0: i32, %arg1: i32) -> (i32, i32) {
    %c0_i32 = arith.constant 0 : i32
    %c0_i32_0 = arith.constant 0 : i32
    %c0_i32_1 = arith.constant 0 : i32
    return %c0_i32, %c0_i32_0 : i32, i32
  }
  func.func @transform_5(%arg0: i32, %arg1: i32) -> (i32, i32) {
    %c0_i32 = arith.constant 0 : i32
    %c0_i32_0 = arith.constant 0 : i32
    %c0_i32_1 = arith.constant 0 : i32
    return %c0_i32, %c0_i32_0 : i32, i32
  }
  func.func @transform_6(%arg0: i32, %arg1: i32) -> (i32, i32) {
    %c0_i32 = arith.constant 0 : i32
    %c0_i32_0 = arith.constant 0 : i32
    %c0_i32_1 = arith.constant 0 : i32
    return %c0_i32, %c0_i32_0 : i32, i32
  }
  func.func @transform_7(%arg0: i32, %arg1: i32) -> (i32, i32) {
    %c0_i32 = arith.constant 0 : i32
    %c0_i32_0 = arith.constant 0 : i32
    %c0_i32_1 = arith.constant 0 : i32
    return %c0_i32, %c0_i32_0 : i32, i32
  }
  func.func @transform_8(%arg0: i32, %arg1: i32) -> (i32, i32, i32) {
    %c0_i32 = arith.constant 0 : i32
    %c0_i32_0 = arith.constant 0 : i32
    %c0_i32_1 = arith.constant 0 : i32
    return %arg0, %c0_i32, %c0_i32_0 : i32, i32, i32
  }
}

</mosaic_0001>

<llo_original>
// kernel: tpu_custom_call.1
$region0: #{tpu_custom_call.1}
  #allocation0 [shape = 'u32[]', space=smem, size = 0x4, offset = 0x4, fixed_abs, tag = 'smem constant byte address 0x4 - core index']
  #allocation1 [shape = 'u32[144,128]{1,0:T(1,128)}', space=vmem, size = 0x12000, scoped, tag = 'internal scratch']
  #allocation2 [shape = 'f32[8,128]{1,0:T(8,128)}', space=vmem, size = 0x1000, scoped, tag = 'scratch operand']
  %s0 = inlined_call_operand.vmem [shape: bf16[128,64], index: 0, kind: input, shape index: {}]
  %s1 = inlined_call_operand.vmem [shape: bf16[64,128], index: 1, kind: input, shape index: {}]
  %s2 = inlined_call_operand.hbm [shape: bf16[128,256], index: 2, kind: input, shape index: {}]
  %s3 = inlined_call_operand.vmem [shape: f32[1,256], index: 3, kind: input, shape index: {}]
  %s4 = inlined_call_operand.hbm [shape: bf16[256,128], index: 4, kind: input, shape index: {}]
  %s5 = inlined_call_operand.vmem [shape: bf16[128,128], index: 5, kind: input, shape index: {}]
  %s6 = inlined_call_operand.vmem [shape: f32[1,128], index: 6, kind: input, shape index: {}]
  %s7 = inlined_call_operand.vmem [shape: f32[8,128], index: 7, kind: input, shape index: {}]
  %s8 = inlined_call_operand.hbm [shape: f32[2,8,128], index: 8, kind: output, shape index: {}]
  %s9 = sld [smem:[#allocation0]]
  $region81: #{tpu_custom_call.1} parent=0
    _
  %s11 = ssub.s32 1, %s9
  %s12 = scalar_select 0, %s11, %s9
  $region1: #{tpu_custom_call.1} parent=0
    #allocation3 [shape = 'u8[65536]{0}', space=vmem, size = 0x10000, scoped, tag = 'input window, operand 2, single buffered']
    #allocation4 [shape = 's32[2]{0}', space=sflag, size = 0x8, scoped, tag = 'scoped memory for tpu_custom_call.1']
    #allocation5 [shape = 's32[2]{0}', space=sflag, size = 0x8, scoped, tag = 'scoped memory for tpu_custom_call.1']
    #allocation6 [shape = 'u8[65536]{0}', space=vmem, size = 0x10000, scoped, tag = 'input window, operand 4, single buffered']
    #allocation7 [shape = 's32[1]{0}', space=sflag, size = 0x4, scoped, tag = 'scoped memory for tpu_custom_call.1']
    #allocation8 [shape = 'u8[8192]{0}', space=vmem, size = 0x2000, scoped, tag = 'output window, operand 0']
    %13 = vsyncpa [#allocation4], 0
    %14 = vsyncpa [#allocation7], 0
    %15 = vsyncpa [#allocation5], 0
    %s16 = scalar_lea.sflag [#allocation5], 1
    %17 = vsyncpa %s16, 0
    loop: start=0, step=1, limit=6
    $region2: #{tpu_custom_call.1} parent=1 // loop_pre_header
      _
    $region3: #{tpu_custom_call.1} parent=1 // loop_header
      %s19 = sphi 0, %s23
      %p20 = scmp.ge.s32.totalorder %s19, 6
      %s26 = sphi 0, %s38
      %s27 = sphi 0, %s34
      %s28 = sphi 0, %s26
      %s29 = sphi 0, %s27
      %s30 = sphi 0, %s28
      %s31 = sphi 0, %s29
      %s45 = sphi 0, %s47
      %s48 = sphi 0, %s45
      %s49 = sphi 0, %s48
      %s65 = sphi 0, %s49
      %s69 = sphi 0, %s69
      %s71 = sphi 0, %s69
      %s72 = sphi 0, %s71
      %s86 = sphi 0, %s72
      %s90 = sphi 0, %s90
      %s92 = sphi 0, %s90
      %s93 = sphi 0, %s92
      %s107 = sphi 0, %s93
      %s111 = sphi 0, %s111
      %s113 = sphi 0, %s111
      %s114 = sphi 0, %s113
      %s128 = sphi 0, %s114
      %s132 = sphi 0, %s132
      %s134 = sphi 0, %s132
      %s135 = sphi 0, %s134
      %s149 = sphi 0, %s135
      %s153 = sphi 0, %s153
      %s155 = sphi 0, %s153
      %s156 = sphi 0, %s155
      %s170 = sphi 0, %s156
      %s174 = sphi 0, %s174
      %s176 = sphi 0, %s174
      %s177 = sphi 0, %s176
      %s191 = sphi 0, %s177
      %s195 = sphi 0, %s195
      %s197 = sphi 0, %s195
      %s198 = sphi 0, %s197
      %s212 = sphi 0, %s198
      %s218 = sphi 0, %s220
      %s221 = sphi 0, %s218
      %s222 = sphi 0, %s221
      %s238 = sphi 0, %s222
    $region4: #{tpu_custom_call.1} parent=1 // loop_header_branch
      %22 = sbr.rel (%p20) target = $region8
    $region5: #{tpu_custom_call.1} parent=1 // loop_body
      %s24 = ssub.s32 %s19, 1
      %s25 = ssub.s32 %s19, 2
      %s32 = sadd.s32 1, %s27
      %p33 = scmp.ge.s32.totalorder %s32, 2
      %s34 = scalar_select %p33, 0, %s32
      %s35 = sadd.s32 1, %s26
      %s36 = scalar_select %p33, %s35, %s26
      %p37 = scmp.ge.s32.totalorder %s36, 2
      %s38 = scalar_select %p37, 0, %s36
      %s39 = smul.u32 %s26, 2
      %s40 = sadd.s32 %s39, %s27
      %s41 = smul.u32 %s38, 2
      %s42 = sadd.s32 %s41, %s34
      %s43 = ssub.s32 %s40, %s42
      %p44 = scmp.eq.s32.totalorder %s43, 0
      %s46 = sadd.s32 %s45, 1
      %s47 = scalar_select %p44, %s45, %s46
      %p50 = pneg %p44
      %p51 = scmp.eq.s32.totalorder %s19, 3
      %p52 = por %p50, %p51
      %p53 = scmp.ne.s32.totalorder %s45, %s48
      %p54 = scmp.eq.s32.totalorder %s19, 0
      %p55 = por %p53, %p54
      %p56 = scmp.ne.s32.totalorder %s45, %s48
      %p57 = scmp.eq.s32.totalorder %s24, 3
      %p58 = por %p56, %p57
      %p59 = scmp.ne.s32.totalorder %s48, %s49
      %p60 = scmp.eq.s32.totalorder %s24, 0
      %p61 = por %p59, %p60
      %p62 = scmp.ne.s32.totalorder %s48, %s49
      %p63 = scmp.eq.s32.totalorder %s25, 3
      %p64 = por %p62, %p63
      %p66 = scmp.ne.s32.totalorder %s49, %s65
      %p67 = scmp.eq.s32.totalorder %s25, 0
      %p68 = por %p66, %p67
      %s70 = sadd.s32 %s69, 1
      %p73 = scmp.eq.s32.totalorder %s19, 3
      %p74 = scmp.ne.s32.totalorder %s69, %s71
      %p75 = scmp.eq.s32.totalorder %s19, 0
      %p76 = por %p74, %p75
      %p77 = scmp.ne.s32.totalorder %s69, %s71
      %p78 = scmp.eq.s32.totalorder %s24, 3
      %p79 = por %p77, %p78
      %p80 = scmp.ne.s32.totalorder %s71, %s72
      %p81 = scmp.eq.s32.totalorder %s24, 0
      %p82 = por %p80, %p81
      %p83 = scmp.ne.s32.totalorder %s71, %s72
      %p84 = scmp.eq.s32.totalorder %s25, 3
      %p85 = por %p83, %p84
      %p87 = scmp.ne.s32.totalorder %s72, %s86
      %p88 = scmp.eq.s32.totalorder %s25, 0
      %p89 = por %p87, %p88
      %s91 = sadd.s32 %s90, 1
      %p94 = scmp.eq.s32.totalorder %s19, 3
      %p95 = scmp.ne.s32.totalorder %s90, %s92
      %p96 = scmp.eq.s32.totalorder %s19, 0
      %p97 = por %p95, %p96
      %p98 = scmp.ne.s32.totalorder %s90, %s92
      %p99 = scmp.eq.s32.totalorder %s24, 3
      %p100 = por %p98, %p99
      %p101 = scmp.ne.s32.totalorder %s92, %s93
      %p102 = scmp.eq.s32.totalorder %s24, 0
      %p103 = por %p101, %p102
      %p104 = scmp.ne.s32.totalorder %s92, %s93
      %p105 = scmp.eq.s32.totalorder %s25, 3
      %p106 = por %p104, %p105
      %p108 = scmp.ne.s32.totalorder %s93, %s107
      %p109 = scmp.eq.s32.totalorder %s25, 0
      %p110 = por %p108, %p109
      %s112 = sadd.s32 %s111, 1
      %p115 = scmp.eq.s32.totalorder %s19, 3
      %p116 = scmp.ne.s32.totalorder %s111, %s113
      %p117 = scmp.eq.s32.totalorder %s19, 0
      %p118 = por %p116, %p117
      %p119 = scmp.ne.s32.totalorder %s111, %s113
      %p120 = scmp.eq.s32.totalorder %s24, 3
      %p121 = por %p119, %p120
      %p122 = scmp.ne.s32.totalorder %s113, %s114
      %p123 = scmp.eq.s32.totalorder %s24, 0
      %p124 = por %p122, %p123
      %p125 = scmp.ne.s32.totalorder %s113, %s114
      %p126 = scmp.eq.s32.totalorder %s25, 3
      %p127 = por %p125, %p126
      %p129 = scmp.ne.s32.totalorder %s114, %s128
      %p130 = scmp.eq.s32.totalorder %s25, 0
      %p131 = por %p129, %p130
      %s133 = sadd.s32 %s132, 1
      %p136 = scmp.eq.s32.totalorder %s19, 3
      %p137 = scmp.ne.s32.totalorder %s132, %s134
      %p138 = scmp.eq.s32.totalorder %s19, 0
      %p139 = por %p137, %p138
      %p140 = scmp.ne.s32.totalorder %s132, %s134
      %p141 = scmp.eq.s32.totalorder %s24, 3
      %p142 = por %p140, %p141
      %p143 = scmp.ne.s32.totalorder %s134, %s135
      %p144 = scmp.eq.s32.totalorder %s24, 0
      %p145 = por %p143, %p144
      %p146 = scmp.ne.s32.totalorder %s134, %s135
      %p147 = scmp.eq.s32.totalorder %s25, 3
      %p148 = por %p146, %p147
      %p150 = scmp.ne.s32.totalorder %s135, %s149
      %p151 = scmp.eq.s32.totalorder %s25, 0
      %p152 = por %p150, %p151
      %s154 = sadd.s32 %s153, 1
      %p157 = scmp.eq.s32.totalorder %s19, 3
      %p158 = scmp.ne.s32.totalorder %s153, %s155
      %p159 = scmp.eq.s32.totalorder %s19, 0
      %p160 = por %p158, %p159
      %p161 = scmp.ne.s32.totalorder %s153, %s155
      %p162 = scmp.eq.s32.totalorder %s24, 3
      %p163 = por %p161, %p162
      %p164 = scmp.ne.s32.totalorder %s155, %s156
      %p165 = scmp.eq.s32.totalorder %s24, 0
      %p166 = por %p164, %p165
      %p167 = scmp.ne.s32.totalorder %s155, %s156
      %p168 = scmp.eq.s32.totalorder %s25, 3
      %p169 = por %p167, %p168
      %p171 = scmp.ne.s32.totalorder %s156, %s170
      %p172 = scmp.eq.s32.totalorder %s25, 0
      %p173 = por %p171, %p172
      %s175 = sadd.s32 %s174, 1
      %p178 = scmp.eq.s32.totalorder %s19, 3
      %p179 = scmp.ne.s32.totalorder %s174, %s176
      %p180 = scmp.eq.s32.totalorder %s19, 0
      %p181 = por %p179, %p180
      %p182 = scmp.ne.s32.totalorder %s174, %s176
      %p183 = scmp.eq.s32.totalorder %s24, 3
      %p184 = por %p182, %p183
      %p185 = scmp.ne.s32.totalorder %s176, %s177
      %p186 = scmp.eq.s32.totalorder %s24, 0
      %p187 = por %p185, %p186
      %p188 = scmp.ne.s32.totalorder %s176, %s177
      %p189 = scmp.eq.s32.totalorder %s25, 3
      %p190 = por %p188, %p189
      %p192 = scmp.ne.s32.totalorder %s177, %s191
      %p193 = scmp.eq.s32.totalorder %s25, 0
      %p194 = por %p192, %p193
      %s196 = sadd.s32 %s195, 1
      %p199 = scmp.eq.s32.totalorder %s19, 3
      %p200 = scmp.ne.s32.totalorder %s195, %s197
      %p201 = scmp.eq.s32.totalorder %s19, 0
      %p202 = por %p200, %p201
      %p203 = scmp.ne.s32.totalorder %s195, %s197
      %p204 = scmp.eq.s32.totalorder %s24, 3
      %p205 = por %p203, %p204
      %p206 = scmp.ne.s32.totalorder %s197, %s198
      %p207 = scmp.eq.s32.totalorder %s24, 0
      %p208 = por %p206, %p207
      %p209 = scmp.ne.s32.totalorder %s197, %s198
      %p210 = scmp.eq.s32.totalorder %s25, 3
      %p211 = por %p209, %p210
      %p213 = scmp.ne.s32.totalorder %s198, %s212
      %p214 = scmp.eq.s32.totalorder %s25, 0
      %p215 = por %p213, %p214
      %s216 = ssub.s32 %s26, %s38
      %p217 = scmp.eq.s32.totalorder %s216, 0
      %s219 = sadd.s32 %s218, 1
      %s220 = scalar_select %p217, %s218, %s219
      %p223 = pneg %p217
      %p224 = scmp.eq.s32.totalorder %s19, 3
      %p225 = por %p223, %p224
      %p226 = scmp.ne.s32.totalorder %s218, %s221
      %p227 = scmp.eq.s32.totalorder %s19, 0
      %p228 = por %p226, %p227
      %p229 = scmp.ne.s32.totalorder %s218, %s221
      %p230 = scmp.eq.s32.totalorder %s24, 3
      %p231 = por %p229, %p230
      %p232 = scmp.ne.s32.totalorder %s221, %s222
      %p233 = scmp.eq.s32.totalorder %s24, 0
      %p234 = por %p232, %p233
      %p235 = scmp.ne.s32.totalorder %s221, %s222
      %p236 = scmp.eq.s32.totalorder %s25, 3
      %p237 = por %p235, %p236
      %p239 = scmp.ne.s32.totalorder %s222, %s238
      %p240 = scmp.eq.s32.totalorder %s25, 0
      %p241 = por %p239, %p240
      %p242 = scmp.le.s32.totalorder 1, %s19
      %p243 = scmp.lt.s32.totalorder %s19, 5
      %p244 = pnand %p242, %p243
      %p245 = pneg %p244
      // Predicated region
      $region9: #{tpu_custom_call.1} parent=5 // pred_check
        _
      $region10: #{tpu_custom_call.1} parent=5 // pred_check_branch
        %247 = sbr.rel (%p244) target = $region12
      $region11: #{tpu_custom_call.1} parent=5 // pred_region
        %s248 = ssub.s32 %s19, 1
        // Predicated region
        $region13: #{tpu_custom_call.1} parent=11 // pred_check
          %p249 = pneg %p82
        $region14: #{tpu_custom_call.1} parent=11 // pred_check_branch
          %251 = sbr.rel (%p249) target = $region16
        $region15: #{tpu_custom_call.1} parent=11 // pred_region
          _
        $region16: #{tpu_custom_call.1} parent=11 // pred_fallthru
          _
        // Predicated region
        $region17: #{tpu_custom_call.1} parent=11 // pred_check
          %p252 = pneg %p103
        $region18: #{tpu_custom_call.1} parent=11 // pred_check_branch
          %254 = sbr.rel (%p252) target = $region20
        $region19: #{tpu_custom_call.1} parent=11 // pred_region
          %s256 = ssub.s32 2048, 2048
          %257 = vsyncadd [#allocation4], %s256
          %s258 = sshll.u32 [#allocation3], 4
          %s259 = int_to_ptr.vmem [resolvable:$true] %s258
          %264 = dma.hbm_to_vmem [thread:$0]  %s2, 2048, %s259, [#allocation4], 128, 128, 8
        $region20: #{tpu_custom_call.1} parent=11 // pred_fallthru
          _
        // Predicated region
        $region21: #{tpu_custom_call.1} parent=11 // pred_check
          %p265 = pneg %p124
        $region22: #{tpu_custom_call.1} parent=11 // pred_check_branch
          %267 = sbr.rel (%p265) target = $region24
        $region23: #{tpu_custom_call.1} parent=11 // pred_region
          _
        $region24: #{tpu_custom_call.1} parent=11 // pred_fallthru
          _
        // Predicated region
        $region25: #{tpu_custom_call.1} parent=11 // pred_check
          %p268 = pneg %p145
        $region26: #{tpu_custom_call.1} parent=11 // pred_check_branch
          %270 = sbr.rel (%p268) target = $region28
        $region27: #{tpu_custom_call.1} parent=11 // pred_region
          %s272 = ssub.s32 2048, 2048
          %273 = vsyncadd [#allocation7], %s272
          %s274 = sshll.u32 [#allocation6], 4
          %s275 = int_to_ptr.vmem [resolvable:$true] %s274
          %280 = dma.hbm_to_vmem [thread:$0]  %s4, 2048, %s275, [#allocation7], 64, 64, 4
        $region28: #{tpu_custom_call.1} parent=11 // pred_fallthru
          _
        // Predicated region
        $region29: #{tpu_custom_call.1} parent=11 // pred_check
          %p281 = pneg %p166
        $region30: #{tpu_custom_call.1} parent=11 // pred_check_branch
          %283 = sbr.rel (%p281) target = $region32
        $region31: #{tpu_custom_call.1} parent=11 // pred_region
          _
        $region32: #{tpu_custom_call.1} parent=11 // pred_fallthru
          _
        // Predicated region
        $region33: #{tpu_custom_call.1} parent=11 // pred_check
          %p284 = pneg %p187
        $region34: #{tpu_custom_call.1} parent=11 // pred_check_branch
          %286 = sbr.rel (%p284) target = $region36
        $region35: #{tpu_custom_call.1} parent=11 // pred_region
          _
        $region36: #{tpu_custom_call.1} parent=11 // pred_fallthru
          _
        // Predicated region
        $region37: #{tpu_custom_call.1} parent=11 // pred_check
          %p287 = pneg %p208
        $region38: #{tpu_custom_call.1} parent=11 // pred_check_branch
          %289 = sbr.rel (%p287) target = $region40
        $region39: #{tpu_custom_call.1} parent=11 // pred_region
          _
        $region40: #{tpu_custom_call.1} parent=11 // pred_fallthru
          _
      $region12: #{tpu_custom_call.1} parent=5 // pred_fallthru
        _
      %p290 = scmp.lt.s32.totalorder %s19, 4
      // Predicated region
      $region41: #{tpu_custom_call.1} parent=5 // pred_check
        %p291 = pneg %p290
      $region42: #{tpu_custom_call.1} parent=5 // pred_check_branch
        %293 = sbr.rel (%p291) target = $region44
      $region43: #{tpu_custom_call.1} parent=5 // pred_region
        // Predicated region
        $region45: #{tpu_custom_call.1} parent=43 // pred_check
          %p294 = pneg %p55
        $region46: #{tpu_custom_call.1} parent=43 // pred_check_branch
          %296 = sbr.rel (%p294) target = $region48
        $region47: #{tpu_custom_call.1} parent=43 // pred_region
          %s297 = smul.u32 %s26, 2
          %s298 = sadd.s32 %s297, %s27
          %s299 = smul.u32 4, %s298
          %p300 = scmp.lt.s32.totalorder %s299, 15
          %s301 = scalar_select %p300, %s299, 15
          %s302 = smul.addr %s301, 4
          %s303 = scalar_lea.vmem %s0, %s302
          %s304 = smul.u32 %s26, 2
          %s305 = sadd.s32 %s304, %s27
          %s306 = smul.u32 4, %s305
        $region48: #{tpu_custom_call.1} parent=43 // pred_fallthru
          _
      $region44: #{tpu_custom_call.1} parent=5 // pred_fallthru
        _
      %p307 = scmp.le.s32.totalorder 1, %s19
      %p308 = scmp.lt.s32.totalorder %s19, 5
      %p309 = pnand %p307, %p308
      %p310 = pneg %p309
      // Predicated region
      $region49: #{tpu_custom_call.1} parent=5 // pred_check
        _
      $region50: #{tpu_custom_call.1} parent=5 // pred_check_branch
        %312 = sbr.rel (%p309) target = $region52
      $region51: #{tpu_custom_call.1} parent=5 // pred_region
        %s313 = ssub.s32 %s19, 1
        // Predicated region
        $region53: #{tpu_custom_call.1} parent=51 // pred_check
          %p314 = pneg %p103
        $region54: #{tpu_custom_call.1} parent=51 // pred_check_branch
          %316 = sbr.rel (%p314) target = $region56
        $region55: #{tpu_custom_call.1} parent=51 // pred_region
          %317 = dma.done [#allocation4], 2048
        $region56: #{tpu_custom_call.1} parent=51 // pred_fallthru
          _
        // Predicated region
        $region57: #{tpu_custom_call.1} parent=51 // pred_check
          %p318 = pneg %p145
        $region58: #{tpu_custom_call.1} parent=51 // pred_check_branch
          %320 = sbr.rel (%p318) target = $region60
        $region59: #{tpu_custom_call.1} parent=51 // pred_region
          %321 = dma.done [#allocation7], 2048
        $region60: #{tpu_custom_call.1} parent=51 // pred_fallthru
          _
        %s322 = smul.u32 %s28, 2
        %s323 = sadd.s32 %s322, %s29
        %s324 = smul.u32 4, %s323
        %p325 = scmp.lt.s32.totalorder %s324, 15
        %s326 = scalar_select %p325, %s324, 15
        %s327 = smul.addr %s326, 4
        %s328 = scalar_lea.vmem %s0, %s327
        %p329 = pneg %p61
        %p330 = pneg %p58
        %p331 = pneg %p82
        %p332 = pneg %p79
        %p333 = pneg %p103
        %p334 = pneg %p100
        %p335 = pneg %p124
        %p336 = pneg %p121
        %p337 = pneg %p145
        %p338 = pneg %p142
        %p339 = pneg %p166
        %p340 = pneg %p163
        %p341 = pneg %p187
        %p342 = pneg %p184
        %p343 = pneg %p208
        %p344 = pneg %p205
        %p345 = pneg %p234
        %p346 = pneg %p231
        %s347 = sand.u32 %s221, 1
        %s348 = scalar_lea.sflag [#allocation5], %s347
        %s349 = sand.u32 %s221, 1
        %s350 = smul.addr %s349, 8
        %s351 = scalar_lea.vmem [#allocation8], %s350
        %s352 = smul.u32 %s28, 2
        %s353 = sadd.s32 %s352, %s29
        %s354 = smul.u32 4, %s353
        %p355 = scmp.lt.s32.totalorder %s354, 15
        %s356 = scalar_select %p355, %s354, 15
        %s357 = smul.addr %s356, 4
        %s358 = scalar_lea.vmem %s0, %s357
        %s359 = smul.u32 %s28, 2
        %s360 = sadd.s32 %s359, %s29
        %s361 = smul.u32 4, %s360
        %v363 = vld [vmem:[%s7] sm:$0x1]
        %v364 = vld [vmem:[%s7 + $0x1] sm:$0x1]
        %v365 = vld [vmem:[%s7 + $0x2] sm:$0x1]
        %v366 = vld [vmem:[%s7 + $0x3] sm:$0x1]
        %v367 = vld [vmem:[%s7 + $0x4] sm:$0x1]
        %v368 = vld [vmem:[%s7 + $0x5] sm:$0x1]
        %p369 = scmp.eq.s32.totalorder %s29, 0
        // Predicated region
        $region61: #{tpu_custom_call.1} parent=51 // pred_check
          %p370 = pneg %p369
        $region62: #{tpu_custom_call.1} parent=51 // pred_check_branch
          %372 = sbr.rel (%p370) target = $region64
        $region63: #{tpu_custom_call.1} parent=51 // pred_region
          %373 = vst [vmem:[#allocation2] sm:$0xff] 0.0
        $region64: #{tpu_custom_call.1} parent=51 // pred_fallthru
          _
        %v374 = vld [vmem:[%s358] sm:$0xf]
        %v375 = vld [vmem:[%s358 + $0x4] sm:$0xf]
        %v376 = vld [vmem:[%s358 + $0x8] sm:$0xf]
        %v377 = vld [vmem:[%s358 + $0xc] sm:$0xf]
        %v378 = vld [vmem:[%s1] sm:$0xf]
        %v379 = vld [vmem:[%s1 + $0x4] sm:$0xf]
        %v380 = vld [vmem:[%s1 + $0x8] sm:$0xf]
        %v381 = vld [vmem:[%s1 + $0xc] sm:$0xf]
        %v382 = vld [vmem:[%s1 + $0x10] sm:$0xf]
        %v383 = vld [vmem:[%s1 + $0x14] sm:$0xf]
        %v384 = vld [vmem:[%s1 + $0x18] sm:$0xf]
        %v385 = vld [vmem:[%s1 + $0x1c] sm:$0xf]
        %v386 = vlaneseq
        %v387 = vshrl.u32 %v386, 7
        %v388 = vsub.s32 0, %v387
        %v389 = vrot.slane %v363, %v388
        %v394 = vunpack.c.l.b16 %v374
        %v395 = vunpack.c.l.b16 %v375
        %v396 = vunpack.c.l.b16 %v376
        %v397 = vunpack.c.l.b16 %v377
        %v398 = vpack.c.b16 %v395, %v394
        %v399 = vpack.c.b16 %v397, %v396
        %v408 = vunpack.c.l.b16 %v378
        %v409 = vunpack.c.l.b16 %v379
        %v410 = vunpack.c.l.b16 %v380
        %v411 = vunpack.c.l.b16 %v381
        %v412 = vunpack.c.l.b16 %v382
        %v413 = vunpack.c.l.b16 %v383
        %v414 = vunpack.c.l.b16 %v384
        %v415 = vunpack.c.l.b16 %v385
        %v416 = vpack.c.b16 %v409, %v408
        %v417 = vpack.c.b16 %v411, %v410
        %v418 = vpack.c.b16 %v413, %v412
        %v419 = vpack.c.b16 %v415, %v414
        %vm424 = vcmask 523264
        %v426 = vsel %vm424, %v398, 0
        %v429 = vsel %vm424, %v399, 0
        %431 = vmatprep.subr.bf16.mxu0 0
        %432 = vmatpush1.bf16.msra.mxu0 %v416
        %433 = vmatprep.subr.bf16.mxu0 0
        %434 = vmatpush1.bf16.msra.mxu0 %v417
        %435 = vmatprep.subr.bf16.mxu0 0
        %436 = vmatpush1.bf16.msra.mxu0 %v418
        %437 = vmatprep.subr.bf16.mxu0 0
        %438 = vmatpush1.bf16.msra.mxu0 %v419
        %439 = vmatprep.subr.bf16.mxu0 0
        %440 = vmatpush1.bf16.msra.mxu0 0
        %441 = vmatprep.subr.bf16.mxu0 0
        %442 = vmatpush1.bf16.msra.mxu0 0
        %443 = vmatprep.subr.bf16.mxu0 0
        %444 = vmatpush1.bf16.msra.mxu0 0
        %445 = vmatprep.subr.bf16.mxu0 0
        %446 = vmatpush1.bf16.msra.mxu0 0
        %447 = vmatprep.subr.bf16.mxu0 0
        %448 = vmatpush1.bf16.msra.mxu0 0
        %449 = vmatprep.subr.bf16.mxu0 0
        %450 = vmatpush1.bf16.msra.mxu0 0
        %451 = vmatprep.subr.bf16.mxu0 0
        %452 = vmatpush1.bf16.msra.mxu0 0
        %453 = vmatprep.subr.bf16.mxu0 0
        %454 = vmatpush1.bf16.msra.mxu0 0
        %455 = vmatprep.subr.bf16.mxu0 0
        %456 = vmatpush1.bf16.msra.mxu0 0
        %457 = vmatprep.subr.bf16.mxu0 0
        %458 = vmatpush1.bf16.msra.mxu0 0
        %459 = vmatprep.subr.bf16.mxu0 0
        %460 = vmatpush1.bf16.msra.mxu0 0
        %461 = vmatprep.subr.bf16.mxu0 0
        %462 = vmatpush1.bf16.msra.mxu0 0
        %463 = vmatprep.mubr.bf16.mxu0 0
        %464 = vmatmul.mubr.bf16.gmra.mrb[0].mxu0 %v426
        %v465 = vpop.f32.mrb[0].mxu0
        %v466 = vadd.f32 %v389, %v465
        %v467 = vpop.f32.mrb[0].mxu0
        %v468 = vpop.f32.mrb[0].mxu0
        %v469 = vadd.f32 %v389, %v468
        %v470 = vpop.f32.mrb[0].mxu0
        %471 = vmatprep.mubr.bf16.mxu0 0
        %472 = vmatmul.mubr.bf16.gmra.mrb[0].mxu0 %v429
        %v473 = vpop.f32.mrb[0].mxu0
        %v474 = vadd.f32 %v389, %v473
        %v475 = vpop.f32.mrb[0].mxu0
        %v476 = vpop.f32.mrb[0].mxu0
        %v477 = vadd.f32 %v389, %v476
        %v478 = vpop.f32.mrb[0].mxu0
        %479 = vdwg.mxu0
        %480 = vadd.xlane.f32.xlu0 %v466
        %v481 = vpop.xlane.xlu0 %480
        %482 = vadd.xlane.f32.xlu0 %v469
        %v483 = vpop.xlane.xlu0 %482
        %484 = vadd.xlane.f32.xlu0 %v474
        %v485 = vpop.xlane.xlu0 %484
        %486 = vadd.xlane.f32.xlu0 %v477
        %v487 = vpop.xlane.xlu0 %486
        %v488 = vrcp.pop 128.0
        %v489 = vmul.f32 %v481, %v488
        %v490 = vmul.f32 %v483, %v488
        %v491 = vmul.f32 %v485, %v488
        %v492 = vmul.f32 %v487, %v488
        %v493 = vsub.f32 %v466, %v489
        %v494 = vsub.f32 %v469, %v490
        %v495 = vsub.f32 %v474, %v491
        %v496 = vsub.f32 %v477, %v492
        %v497 = vmul.f32 %v493, %v493
        %v498 = vmul.f32 %v494, %v494
        %v499 = vmul.f32 %v495, %v495
        %v500 = vmul.f32 %v496, %v496
        %501 = vadd.xlane.f32.xlu0 %v497
        %v502 = vpop.xlane.xlu0 %501
        %503 = vadd.xlane.f32.xlu0 %v498
        %v504 = vpop.xlane.xlu0 %503
        %505 = vadd.xlane.f32.xlu0 %v499
        %v506 = vpop.xlane.xlu0 %505
        %507 = vadd.xlane.f32.xlu0 %v500
        %v508 = vpop.xlane.xlu0 %507
        %v509 = vmul.f32 %v502, %v488
        %v510 = vmul.f32 %v504, %v488
        %v511 = vmul.f32 %v506, %v488
        %v512 = vmul.f32 %v508, %v488
        %v513 = vadd.f32 %v509, 1e-05
        %v514 = vadd.f32 %v510, 1e-05
        %v515 = vadd.f32 %v511, 1e-05
        %v516 = vadd.f32 %v512, 1e-05
        %v517 = vrsqrt.pop %v513
        %v518 = vrsqrt.pop %v514
        %v519 = vrsqrt.pop %v515
        %v520 = vrsqrt.pop %v516
        %v521 = vmul.f32 %v493, %v517
        %v522 = vmul.f32 %v494, %v518
        %v523 = vmul.f32 %v495, %v519
        %v524 = vmul.f32 %v496, %v520
        %v525 = vlaneseq
        %v526 = vshrl.u32 %v525, 7
        %v527 = vsub.s32 0, %v526
        %v528 = vrot.slane %v364, %v527
        %v529 = vmul.f32 %v521, %v528
        %v530 = vmul.f32 %v522, %v528
        %v531 = vmul.f32 %v523, %v528
        %v532 = vmul.f32 %v524, %v528
        %v533 = vlaneseq
        %v534 = vshrl.u32 %v533, 7
        %v535 = vsub.s32 0, %v534
        %v536 = vrot.slane %v365, %v535
        %v537 = vadd.f32 %v529, %v536
        %v538 = vadd.f32 %v530, %v536
        %v539 = vadd.f32 %v531, %v536
        %v540 = vadd.f32 %v532, %v536
        %v541 = vpack.c.bf16 %v538, %v537
        %v542 = vpack.c.bf16 %v540, %v539
        %v543 = vld [vmem:[#allocation3] sm:$0xff]
        %v544 = vld [vmem:[#allocation3 + $0x8] sm:$0xff]
        %v545 = vld [vmem:[#allocation3 + $0x10] sm:$0xff]
        %v546 = vld [vmem:[#allocation3 + $0x18] sm:$0xff]
        %v547 = vld [vmem:[#allocation3 + $0x20] sm:$0xff]
        %v548 = vld [vmem:[#allocation3 + $0x28] sm:$0xff]
        %v549 = vld [vmem:[#allocation3 + $0x30] sm:$0xff]
        %v550 = vld [vmem:[#allocation3 + $0x38] sm:$0xff]
        %v551 = vld [vmem:[#allocation3 + $0x40] sm:$0xff]
        %v552 = vld [vmem:[#allocation3 + $0x48] sm:$0xff]
        %v553 = vld [vmem:[#allocation3 + $0x50] sm:$0xff]
        %v554 = vld [vmem:[#allocation3 + $0x58] sm:$0xff]
        %v555 = vld [vmem:[#allocation3 + $0x60] sm:$0xff]
        %v556 = vld [vmem:[#allocation3 + $0x68] sm:$0xff]
        %v557 = vld [vmem:[#allocation3 + $0x70] sm:$0xff]
        %v558 = vld [vmem:[#allocation3 + $0x78] sm:$0xff]
        %v559 = vld [vmem:[%s3] sm:$0x3]
        %v561 = vlaneseq
        %v562 = vshrl.u32 %v561, 7
        %v563 = vsub.s32 0, %v562
        %v564 = vrot.slane %v559, %v563
        %v565 = vlaneseq
        %v566 = vshrl.u32 %v565, 7
        %v567 = vsub.s32 1, %v566
        %v568 = vrot.slane %v559, %v567
        %v587 = vunpack.c.l.b16 %v543
        %v588 = vunpack.c.h.b16 %v543
        %v589 = vunpack.c.l.b16 %v544
        %v590 = vunpack.c.h.b16 %v544
        %v591 = vunpack.c.l.b16 %v545
        %v592 = vunpack.c.h.b16 %v545
        %v593 = vunpack.c.l.b16 %v546
        %v594 = vunpack.c.h.b16 %v546
        %v595 = vunpack.c.l.b16 %v547
        %v596 = vunpack.c.h.b16 %v547
        %v597 = vunpack.c.l.b16 %v548
        %v598 = vunpack.c.h.b16 %v548
        %v599 = vunpack.c.l.b16 %v549
        %v600 = vunpack.c.h.b16 %v549
        %v601 = vunpack.c.l.b16 %v550
        %v602 = vunpack.c.h.b16 %v550
        %v603 = vunpack.c.l.b16 %v551
        %v604 = vunpack.c.h.b16 %v551
        %v605 = vunpack.c.l.b16 %v552
        %v606 = vunpack.c.h.b16 %v552
        %v607 = vunpack.c.l.b16 %v553
        %v608 = vunpack.c.h.b16 %v553
        %v609 = vunpack.c.l.b16 %v554
        %v610 = vunpack.c.h.b16 %v554
        %v611 = vunpack.c.l.b16 %v555
        %v612 = vunpack.c.h.b16 %v555
        %v613 = vunpack.c.l.b16 %v556
        %v614 = vunpack.c.h.b16 %v556
        %v615 = vunpack.c.l.b16 %v557
        %v616 = vunpack.c.h.b16 %v557
        %v617 = vunpack.c.l.b16 %v558
        %v618 = vunpack.c.h.b16 %v558
        %v619 = vpack.c.b16 %v589, %v587
        %v620 = vpack.c.b16 %v590, %v588
        %v621 = vpack.c.b16 %v593, %v591
        %v622 = vpack.c.b16 %v594, %v592
        %v623 = vpack.c.b16 %v597, %v595
        %v624 = vpack.c.b16 %v598, %v596
        %v625 = vpack.c.b16 %v601, %v599
        %v626 = vpack.c.b16 %v602, %v600
        %v627 = vpack.c.b16 %v605, %v603
        %v628 = vpack.c.b16 %v606, %v604
        %v629 = vpack.c.b16 %v609, %v607
        %v630 = vpack.c.b16 %v610, %v608
        %v631 = vpack.c.b16 %v613, %v611
        %v632 = vpack.c.b16 %v614, %v612
        %v633 = vpack.c.b16 %v617, %v615
        %v634 = vpack.c.b16 %v618, %v616
        %651 = vmatprep.subr.bf16.mxu0 %v620
        %652 = vmatpush1.bf16.msra.mxu0 %v619
        %653 = vmatprep.subr.bf16.mxu0 %v622
        %654 = vmatpush1.bf16.msra.mxu0 %v621
        %655 = vmatprep.subr.bf16.mxu0 %v624
        %656 = vmatpush1.bf16.msra.mxu0 %v623
        %657 = vmatprep.subr.bf16.mxu0 %v626
        %658 = vmatpush1.bf16.msra.mxu0 %v625
        %659 = vmatprep.subr.bf16.mxu0 %v628
        %660 = vmatpush1.bf16.msra.mxu0 %v627
        %661 = vmatprep.subr.bf16.mxu0 %v630
        %662 = vmatpush1.bf16.msra.mxu0 %v629
        %663 = vmatprep.subr.bf16.mxu0 %v632
        %664 = vmatpush1.bf16.msra.mxu0 %v631
        %665 = vmatprep.subr.bf16.mxu0 %v634
        %666 = vmatpush1.bf16.msra.mxu0 %v633
        %667 = vmatprep.subr.bf16.mxu0 0
        %668 = vmatpush1.bf16.msra.mxu0 0
        %669 = vmatprep.subr.bf16.mxu0 0
        %670 = vmatpush1.bf16.msra.mxu0 0
        %671 = vmatprep.subr.bf16.mxu0 0
        %672 = vmatpush1.bf16.msra.mxu0 0
        %673 = vmatprep.subr.bf16.mxu0 0
        %674 = vmatpush1.bf16.msra.mxu0 0
        %675 = vmatprep.subr.bf16.mxu0 0
        %676 = vmatpush1.bf16.msra.mxu0 0
        %677 = vmatprep.subr.bf16.mxu0 0
        %678 = vmatpush1.bf16.msra.mxu0 0
        %679 = vmatprep.subr.bf16.mxu0 0
        %680 = vmatpush1.bf16.msra.mxu0 0
        %681 = vmatprep.subr.bf16.mxu0 0
        %682 = vmatpush1.bf16.msra.mxu0 0
        %683 = vmatprep.mubr.bf16.mxu0 0
        %684 = vmatmul.mubr.bf16.gmra.mrb[0].mxu0 %v541
        %v685 = vpop.f32.mrb[0].mxu0
        %v686 = vadd.f32 %v564, %v685
        %v687 = vpop.f32.mrb[0].mxu0
        %v688 = vadd.f32 %v568, %v687
        %v689 = vpop.f32.mrb[0].mxu0
        %v690 = vadd.f32 %v564, %v689
        %v691 = vpop.f32.mrb[0].mxu0
        %v692 = vadd.f32 %v568, %v691
        %693 = vmatprep.mubr.bf16.mxu0 0
        %694 = vmatmul.mubr.bf16.gmra.mrb[0].mxu0 %v542
        %v695 = vpop.f32.mrb[0].mxu0
        %v696 = vadd.f32 %v564, %v695
        %v697 = vpop.f32.mrb[0].mxu0
        %v698 = vadd.f32 %v568, %v697
        %v699 = vpop.f32.mrb[0].mxu0
        %v700 = vadd.f32 %v564, %v699
        %v701 = vpop.f32.mrb[0].mxu0
        %v702 = vadd.f32 %v568, %v701
        %703 = vdwg.mxu0
        %v704 = vmul.f32 %v686, %v686
        %v705 = vmul.f32 %v688, %v688
        %v706 = vmul.f32 %v690, %v690
        %v707 = vmul.f32 %v692, %v692
        %v708 = vmul.f32 %v696, %v696
        %v709 = vmul.f32 %v698, %v698
        %v710 = vmul.f32 %v700, %v700
        %v711 = vmul.f32 %v702, %v702
        %v712 = vmul.f32 %v686, %v704
        %v713 = vmul.f32 %v688, %v705
        %v714 = vmul.f32 %v690, %v706
        %v715 = vmul.f32 %v692, %v707
        %v716 = vmul.f32 %v696, %v708
        %v717 = vmul.f32 %v698, %v709
        %v718 = vmul.f32 %v700, %v710
        %v719 = vmul.f32 %v702, %v711
        %v720 = vmul.f32 %v712, 0.044715
        %v721 = vmul.f32 %v713, 0.044715
        %v722 = vmul.f32 %v714, 0.044715
        %v723 = vmul.f32 %v715, 0.044715
        %v724 = vmul.f32 %v716, 0.044715
        %v725 = vmul.f32 %v717, 0.044715
        %v726 = vmul.f32 %v718, 0.044715
        %v727 = vmul.f32 %v719, 0.044715
        %v728 = vadd.f32 %v686, %v720
        %v729 = vadd.f32 %v688, %v721
        %v730 = vadd.f32 %v690, %v722
        %v731 = vadd.f32 %v692, %v723
        %v732 = vadd.f32 %v696, %v724
        %v733 = vadd.f32 %v698, %v725
        %v734 = vadd.f32 %v700, %v726
        %v735 = vadd.f32 %v702, %v727
        %v736 = vmul.f32 %v728, 0.7978846
        %v737 = vmul.f32 %v729, 0.7978846
        %v738 = vmul.f32 %v730, 0.7978846
        %v739 = vmul.f32 %v731, 0.7978846
        %v740 = vmul.f32 %v732, 0.7978846
        %v741 = vmul.f32 %v733, 0.7978846
        %v742 = vmul.f32 %v734, 0.7978846
        %v743 = vmul.f32 %v735, 0.7978846
        %v744 = vtanh.pop %v736
        %v745 = vtanh.pop %v737
        %v746 = vtanh.pop %v738
        %v747 = vtanh.pop %v739
        %v748 = vtanh.pop %v740
        %v749 = vtanh.pop %v741
        %v750 = vtanh.pop %v742
        %v751 = vtanh.pop %v743
        %v752 = vadd.f32 %v744, 1.0
        %v753 = vadd.f32 %v745, 1.0
        %v754 = vadd.f32 %v746, 1.0
        %v755 = vadd.f32 %v747, 1.0
        %v756 = vadd.f32 %v748, 1.0
        %v757 = vadd.f32 %v749, 1.0
        %v758 = vadd.f32 %v750, 1.0
        %v759 = vadd.f32 %v751, 1.0
        %v760 = vmul.f32 %v752, 0.5
        %v761 = vmul.f32 %v753, 0.5
        %v762 = vmul.f32 %v754, 0.5
        %v763 = vmul.f32 %v755, 0.5
        %v764 = vmul.f32 %v756, 0.5
        %v765 = vmul.f32 %v757, 0.5
        %v766 = vmul.f32 %v758, 0.5
        %v767 = vmul.f32 %v759, 0.5
        %v768 = vmul.f32 %v686, %v760
        %v769 = vmul.f32 %v688, %v761
        %v770 = vmul.f32 %v690, %v762
        %v771 = vmul.f32 %v692, %v763
        %v772 = vmul.f32 %v696, %v764
        %v773 = vmul.f32 %v698, %v765
        %v774 = vmul.f32 %v700, %v766
        %v775 = vmul.f32 %v702, %v767
        %v776 = vpack.c.bf16 %v770, %v768
        %v777 = vpack.c.bf16 %v771, %v769
        %v778 = vpack.c.bf16 %v774, %v772
        %v779 = vpack.c.bf16 %v775, %v773
        %v780 = vld [vmem:[#allocation6] sm:$0xf]
        %v781 = vld [vmem:[#allocation6 + $0x4] sm:$0xf]
        %v782 = vld [vmem:[#allocation6 + $0x8] sm:$0xf]
        %v783 = vld [vmem:[#allocation6 + $0xc] sm:$0xf]
        %v784 = vld [vmem:[#allocation6 + $0x10] sm:$0xf]
        %v785 = vld [vmem:[#allocation6 + $0x14] sm:$0xf]
        %v786 = vld [vmem:[#allocation6 + $0x18] sm:$0xf]
        %v787 = vld [vmem:[#allocation6 + $0x1c] sm:$0xf]
        %v788 = vld [vmem:[#allocation6 + $0x20] sm:$0xf]
        %v789 = vld [vmem:[#allocation6 + $0x24] sm:$0xf]
        %v790 = vld [vmem:[#allocation6 + $0x28] sm:$0xf]
        %v791 = vld [vmem:[#allocation6 + $0x2c] sm:$0xf]
        %v792 = vld [vmem:[#allocation6 + $0x30] sm:$0xf]
        %v793 = vld [vmem:[#allocation6 + $0x34] sm:$0xf]
        %v794 = vld [vmem:[#allocation6 + $0x38] sm:$0xf]
        %v795 = vld [vmem:[#allocation6 + $0x3c] sm:$0xf]
        %v796 = vld [vmem:[#allocation6 + $0x40] sm:$0xf]
        %v797 = vld [vmem:[#allocation6 + $0x44] sm:$0xf]
        %v798 = vld [vmem:[#allocation6 + $0x48] sm:$0xf]
        %v799 = vld [vmem:[#allocation6 + $0x4c] sm:$0xf]
        %v800 = vld [vmem:[#allocation6 + $0x50] sm:$0xf]
        %v801 = vld [vmem:[#allocation6 + $0x54] sm:$0xf]
        %v802 = vld [vmem:[#allocation6 + $0x58] sm:$0xf]
        %v803 = vld [vmem:[#allocation6 + $0x5c] sm:$0xf]
        %v804 = vld [vmem:[#allocation6 + $0x60] sm:$0xf]
        %v805 = vld [vmem:[#allocation6 + $0x64] sm:$0xf]
        %v806 = vld [vmem:[#allocation6 + $0x68] sm:$0xf]
        %v807 = vld [vmem:[#allocation6 + $0x6c] sm:$0xf]
        %v808 = vld [vmem:[#allocation6 + $0x70] sm:$0xf]
        %v809 = vld [vmem:[#allocation6 + $0x74] sm:$0xf]
        %v810 = vld [vmem:[#allocation6 + $0x78] sm:$0xf]
        %v811 = vld [vmem:[#allocation6 + $0x7c] sm:$0xf]
        %v844 = vunpack.c.l.b16 %v780
        %v845 = vunpack.c.l.b16 %v781
        %v846 = vunpack.c.l.b16 %v782
        %v847 = vunpack.c.l.b16 %v783
        %v848 = vunpack.c.l.b16 %v784
        %v849 = vunpack.c.l.b16 %v785
        %v850 = vunpack.c.l.b16 %v786
        %v851 = vunpack.c.l.b16 %v787
        %v852 = vunpack.c.l.b16 %v788
        %v853 = vunpack.c.l.b16 %v789
        %v854 = vunpack.c.l.b16 %v790
        %v855 = vunpack.c.l.b16 %v791
        %v856 = vunpack.c.l.b16 %v792
        %v857 = vunpack.c.l.b16 %v793
        %v858 = vunpack.c.l.b16 %v794
        %v859 = vunpack.c.l.b16 %v795
        %v860 = vunpack.c.l.b16 %v796
        %v861 = vunpack.c.l.b16 %v797
        %v862 = vunpack.c.l.b16 %v798
        %v863 = vunpack.c.l.b16 %v799
        %v864 = vunpack.c.l.b16 %v800
        %v865 = vunpack.c.l.b16 %v801
        %v866 = vunpack.c.l.b16 %v802
        %v867 = vunpack.c.l.b16 %v803
        %v868 = vunpack.c.l.b16 %v804
        %v869 = vunpack.c.l.b16 %v805
        %v870 = vunpack.c.l.b16 %v806
        %v871 = vunpack.c.l.b16 %v807
        %v872 = vunpack.c.l.b16 %v808
        %v873 = vunpack.c.l.b16 %v809
        %v874 = vunpack.c.l.b16 %v810
        %v875 = vunpack.c.l.b16 %v811
        %v876 = vpack.c.b16 %v845, %v844
        %v877 = vpack.c.b16 %v847, %v846
        %v878 = vpack.c.b16 %v849, %v848
        %v879 = vpack.c.b16 %v851, %v850
        %v880 = vpack.c.b16 %v853, %v852
        %v881 = vpack.c.b16 %v855, %v854
        %v882 = vpack.c.b16 %v857, %v856
        %v883 = vpack.c.b16 %v859, %v858
        %v884 = vpack.c.b16 %v861, %v860
        %v885 = vpack.c.b16 %v863, %v862
        %v886 = vpack.c.b16 %v865, %v864
        %v887 = vpack.c.b16 %v867, %v866
        %v888 = vpack.c.b16 %v869, %v868
        %v889 = vpack.c.b16 %v871, %v870
        %v890 = vpack.c.b16 %v873, %v872
        %v891 = vpack.c.b16 %v875, %v874
        %908 = vmatprep.subr.bf16.mxu0 0
        %909 = vmatpush1.bf16.msra.mxu0 %v876
        %910 = vmatprep.subr.bf16.mxu0 0
        %911 = vmatpush1.bf16.msra.mxu0 %v877
        %912 = vmatprep.subr.bf16.mxu0 0
        %913 = vmatpush1.bf16.msra.mxu0 %v878
        %914 = vmatprep.subr.bf16.mxu0 0
        %915 = vmatpush1.bf16.msra.mxu0 %v879
        %916 = vmatprep.subr.bf16.mxu0 0
        %917 = vmatpush1.bf16.msra.mxu0 %v880
        %918 = vmatprep.subr.bf16.mxu0 0
        %919 = vmatpush1.bf16.msra.mxu0 %v881
        %920 = vmatprep.subr.bf16.mxu0 0
        %921 = vmatpush1.bf16.msra.mxu0 %v882
        %922 = vmatprep.subr.bf16.mxu0 0
        %923 = vmatpush1.bf16.msra.mxu0 %v883
        %924 = vmatprep.subr.bf16.mxu0 0
        %925 = vmatpush1.bf16.msra.mxu0 %v884
        %926 = vmatprep.subr.bf16.mxu0 0
        %927 = vmatpush1.bf16.msra.mxu0 %v885
        %928 = vmatprep.subr.bf16.mxu0 0
        %929 = vmatpush1.bf16.msra.mxu0 %v886
        %930 = vmatprep.subr.bf16.mxu0 0
        %931 = vmatpush1.bf16.msra.mxu0 %v887
        %932 = vmatprep.subr.bf16.mxu0 0
        %933 = vmatpush1.bf16.msra.mxu0 %v888
        %934 = vmatprep.subr.bf16.mxu0 0
        %935 = vmatpush1.bf16.msra.mxu0 %v889
        %936 = vmatprep.subr.bf16.mxu0 0
        %937 = vmatpush1.bf16.msra.mxu0 %v890
        %938 = vmatprep.subr.bf16.mxu0 0
        %939 = vmatpush1.bf16.msra.mxu0 %v891
        %940 = vmatprep.mubr.bf16.mxu0 %v777
        %941 = vmatmul.mubr.bf16.gmra.mrb[0].mxu0 %v776
        %v942 = vpop.f32.mrb[0].mxu0
        %v943 = vadd.f32 0.0, %v942
        %v944 = vpop.f32.mrb[0].mxu0
        %v945 = vpop.f32.mrb[0].mxu0
        %v946 = vadd.f32 0.0, %v945
        %v947 = vpop.f32.mrb[0].mxu0
        %948 = vmatprep.mubr.bf16.mxu0 %v779
        %949 = vmatmul.mubr.bf16.gmra.mrb[0].mxu0 %v778
        %v950 = vpop.f32.mrb[0].mxu0
        %v951 = vadd.f32 0.0, %v950
        %v952 = vpop.f32.mrb[0].mxu0
        %v953 = vpop.f32.mrb[0].mxu0
        %v954 = vadd.f32 0.0, %v953
        %v955 = vpop.f32.mrb[0].mxu0
        %956 = vdwg.mxu0
        %v957 = vadd.f32 %v466, %v943
        %v958 = vadd.f32 %v469, %v946
        %v959 = vadd.f32 %v474, %v951
        %v960 = vadd.f32 %v477, %v954
        %v961 = vlaneseq
        %v962 = vshrl.u32 %v961, 7
        %v963 = vsub.s32 0, %v962
        %v964 = vrot.slane %v366, %v963
        %v965 = vadd.f32 %v957, %v964
        %v966 = vadd.f32 %v958, %v964
        %v967 = vadd.f32 %v959, %v964
        %v968 = vadd.f32 %v960, %v964
        %969 = vadd.xlane.f32.xlu0 %v965
        %v970 = vpop.xlane.xlu0 %969
        %971 = vadd.xlane.f32.xlu0 %v966
        %v972 = vpop.xlane.xlu0 %971
        %973 = vadd.xlane.f32.xlu0 %v967
        %v974 = vpop.xlane.xlu0 %973
        %975 = vadd.xlane.f32.xlu0 %v968
        %v976 = vpop.xlane.xlu0 %975
        %v977 = vmul.f32 %v970, %v488
        %v978 = vmul.f32 %v972, %v488
        %v979 = vmul.f32 %v974, %v488
        %v980 = vmul.f32 %v976, %v488
        %v981 = vsub.f32 %v965, %v977
        %v982 = vsub.f32 %v966, %v978
        %v983 = vsub.f32 %v967, %v979
        %v984 = vsub.f32 %v968, %v980
        %v985 = vmul.f32 %v981, %v981
        %v986 = vmul.f32 %v982, %v982
        %v987 = vmul.f32 %v983, %v983
        %v988 = vmul.f32 %v984, %v984
        %989 = vadd.xlane.f32.xlu0 %v985
        %v990 = vpop.xlane.xlu0 %989
        %991 = vadd.xlane.f32.xlu0 %v986
        %v992 = vpop.xlane.xlu0 %991
        %993 = vadd.xlane.f32.xlu0 %v987
        %v994 = vpop.xlane.xlu0 %993
        %995 = vadd.xlane.f32.xlu0 %v988
        %v996 = vpop.xlane.xlu0 %995
        %v997 = vmul.f32 %v990, %v488
        %v998 = vmul.f32 %v992, %v488
        %v999 = vmul.f32 %v994, %v488
        %v1000 = vmul.f32 %v996, %v488
        %v1001 = vadd.f32 %v997, 1e-05
        %v1002 = vadd.f32 %v998, 1e-05
        %v1003 = vadd.f32 %v999, 1e-05
        %v1004 = vadd.f32 %v1000, 1e-05
        %v1005 = vrsqrt.pop %v1001
        %v1006 = vrsqrt.pop %v1002
        %v1007 = vrsqrt.pop %v1003
        %v1008 = vrsqrt.pop %v1004
        %v1009 = vmul.f32 %v981, %v1005
        %v1010 = vmul.f32 %v982, %v1006
        %v1011 = vmul.f32 %v983, %v1007
        %v1012 = vmul.f32 %v984, %v1008
        %v1013 = vlaneseq
        %v1014 = vshrl.u32 %v1013, 7
        %v1015 = vsub.s32 0, %v1014
        %v1016 = vrot.slane %v367, %v1015
        %v1017 = vmul.f32 %v1009, %v1016
        %v1018 = vmul.f32 %v1010, %v1016
        %v1019 = vmul.f32 %v1011, %v1016
        %v1020 = vmul.f32 %v1012, %v1016
        %v1021 = vlaneseq
        %v1022 = vshrl.u32 %v1021, 7
        %v1023 = vsub.s32 0, %v1022
        %v1024 = vrot.slane %v368, %v1023
        %v1025 = vadd.f32 %v1017, %v1024
        %v1026 = vadd.f32 %v1018, %v1024
        %v1027 = vadd.f32 %v1019, %v1024
        %v1028 = vadd.f32 %v1020, %v1024
        %v1029 = vld [vmem:[#allocation2] sm:$0xff]
        %v1030 = vadd.f32 %v1025, %v1026
        %v1031 = vadd.f32 %v1030, %v1027
        %v1032 = vadd.f32 %v1031, %v1028
        %v1033 = vadd.f32 %v1029, %v1032
        %1034 = vst [vmem:[#allocation2] sm:$0xff] %v1033
        %p1035 = scmp.eq.s32.totalorder %s29, 1
        // Predicated region
        $region65: #{tpu_custom_call.1} parent=51 // pred_check
          %p1036 = pneg %p1035
        $region66: #{tpu_custom_call.1} parent=51 // pred_check_branch
          %1038 = sbr.rel (%p1036) target = $region68
        $region67: #{tpu_custom_call.1} parent=51 // pred_region
          %v1039 = vld [vmem:[#allocation2] sm:$0xff]
          %v1040 = vrot.slane %v1039, 4
          %v1041 = vadd.f32 %v1039, %v1040
          %v1042 = vrot.slane %v1041, 2
          %v1043 = vadd.f32 %v1041, %v1042
          %v1044 = vrot.slane %v1043, 1
          %v1045 = vadd.f32 %v1043, %v1044
          %v1046 = vmul.f32 %v1045, 0.015625
          %v1047 = vpack.c.bf16 %v1046, %v1046
          %v1048 = vld [vmem:[%s5] sm:$0xf]
          %v1049 = vld [vmem:[%s5 + $0x4] sm:$0xf]
          %v1050 = vld [vmem:[%s5 + $0x8] sm:$0xf]
          %v1051 = vld [vmem:[%s5 + $0xc] sm:$0xf]
          %v1052 = vld [vmem:[%s5 + $0x10] sm:$0xf]
          %v1053 = vld [vmem:[%s5 + $0x14] sm:$0xf]
          %v1054 = vld [vmem:[%s5 + $0x18] sm:$0xf]
          %v1055 = vld [vmem:[%s5 + $0x1c] sm:$0xf]
          %v1056 = vld [vmem:[%s5 + $0x20] sm:$0xf]
          %v1057 = vld [vmem:[%s5 + $0x24] sm:$0xf]
          %v1058 = vld [vmem:[%s5 + $0x28] sm:$0xf]
          %v1059 = vld [vmem:[%s5 + $0x2c] sm:$0xf]
          %v1060 = vld [vmem:[%s5 + $0x30] sm:$0xf]
          %v1061 = vld [vmem:[%s5 + $0x34] sm:$0xf]
          %v1062 = vld [vmem:[%s5 + $0x38] sm:$0xf]
          %v1063 = vld [vmem:[%s5 + $0x3c] sm:$0xf]
          %v1064 = vld [vmem:[%s6] sm:$0x1]
          %v1081 = vunpack.c.l.b16 %v1048
          %v1082 = vunpack.c.l.b16 %v1049
          %v1083 = vunpack.c.l.b16 %v1050
          %v1084 = vunpack.c.l.b16 %v1051
          %v1085 = vunpack.c.l.b16 %v1052
          %v1086 = vunpack.c.l.b16 %v1053
          %v1087 = vunpack.c.l.b16 %v1054
          %v1088 = vunpack.c.l.b16 %v1055
          %v1089 = vunpack.c.l.b16 %v1056
          %v1090 = vunpack.c.l.b16 %v1057
          %v1091 = vunpack.c.l.b16 %v1058
          %v1092 = vunpack.c.l.b16 %v1059
          %v1093 = vunpack.c.l.b16 %v1060
          %v1094 = vunpack.c.l.b16 %v1061
          %v1095 = vunpack.c.l.b16 %v1062
          %v1096 = vunpack.c.l.b16 %v1063
          %v1097 = vpack.c.b16 %v1082, %v1081
          %v1098 = vpack.c.b16 %v1084, %v1083
          %v1099 = vpack.c.b16 %v1086, %v1085
          %v1100 = vpack.c.b16 %v1088, %v1087
          %v1101 = vpack.c.b16 %v1090, %v1089
          %v1102 = vpack.c.b16 %v1092, %v1091
          %v1103 = vpack.c.b16 %v1094, %v1093
          %v1104 = vpack.c.b16 %v1096, %v1095
          %1113 = vmatprep.subr.bf16.mxu0 0
          %1114 = vmatpush1.bf16.msra.mxu0 %v1097
          %1115 = vmatprep.subr.bf16.mxu0 0
          %1116 = vmatpush1.bf16.msra.mxu0 %v1098
          %1117 = vmatprep.subr.bf16.mxu0 0
          %1118 = vmatpush1.bf16.msra.mxu0 %v1099
          %1119 = vmatprep.subr.bf16.mxu0 0
          %1120 = vmatpush1.bf16.msra.mxu0 %v1100
          %1121 = vmatprep.subr.bf16.mxu0 0
          %1122 = vmatpush1.bf16.msra.mxu0 %v1101
          %1123 = vmatprep.subr.bf16.mxu0 0
          %1124 = vmatpush1.bf16.msra.mxu0 %v1102
          %1125 = vmatprep.subr.bf16.mxu0 0
          %1126 = vmatpush1.bf16.msra.mxu0 %v1103
          %1127 = vmatprep.subr.bf16.mxu0 0
          %1128 = vmatpush1.bf16.msra.mxu0 %v1104
          %1129 = vmatprep.subr.bf16.mxu0 0
          %1130 = vmatpush1.bf16.msra.mxu0 0
          %1131 = vmatprep.subr.bf16.mxu0 0
          %1132 = vmatpush1.bf16.msra.mxu0 0
          %1133 = vmatprep.subr.bf16.mxu0 0
          %1134 = vmatpush1.bf16.msra.mxu0 0
          %1135 = vmatprep.subr.bf16.mxu0 0
          %1136 = vmatpush1.bf16.msra.mxu0 0
          %1137 = vmatprep.subr.bf16.mxu0 0
          %1138 = vmatpush1.bf16.msra.mxu0 0
          %1139 = vmatprep.subr.bf16.mxu0 0
          %1140 = vmatpush1.bf16.msra.mxu0 0
          %1141 = vmatprep.subr.bf16.mxu0 0
          %1142 = vmatpush1.bf16.msra.mxu0 0
          %1143 = vmatprep.subr.bf16.mxu0 0
          %1144 = vmatpush1.bf16.msra.mxu0 0
          %1145 = vmatprep.mubr.bf16.mxu0 0
          %1146 = vmatmul.mubr.bf16.gmra.mrb[0].mxu0 %v1047
          %v1147 = vpop.f32.mrb[0].mxu0
          %v1148 = vadd.f32 %v1064, %v1147
          %v1149 = vpop.f32.mrb[0].mxu0
          %v1150 = vpop.f32.mrb[0].mxu0
          %v1151 = vpop.f32.mrb[0].mxu0
          %1152 = vdwg.mxu0
          %v1153 = vlaneseq
          %v1154 = vshrl.u32 %v1153, 7
          %v1155 = vsub.s32 0, %v1154
          %v1156 = vrot.slane %v1148, %v1155
          %1157 = vst [vmem:[%s351] sm:$0xff] %v1156
        $region68: #{tpu_custom_call.1} parent=51 // pred_fallthru
          _
        %s1158 = sand.u32 %s221, 1
        %s1159 = scalar_lea.sflag [#allocation5], %s1158
        %s1160 = sand.u32 %s221, 1
        %s1161 = smul.addr %s1160, 8
        %s1162 = scalar_lea.vmem [#allocation8], %s1161
        // Predicated region
        $region69: #{tpu_custom_call.1} parent=51 // pred_check
          %p1163 = pneg %p231
        $region70: #{tpu_custom_call.1} parent=51 // pred_check_branch
          %1165 = sbr.rel (%p1163) target = $region72
        $region71: #{tpu_custom_call.1} parent=51 // pred_region
          %s1167 = ssub.s32 128, 128
          %1168 = vsyncadd %s1159, %s1167
          %s1169 = smul.addr %s28, 128
          %s1170 = scalar_lea.hbm %s8, %s1169
          %s1172 = sshll.u32 %s1162, 4
          %s1173 = int_to_ptr.vmem [resolvable:$true] %s1172
          %1175 = dma.vmem_to_hbm [thread:$0]  %s1173, 128, %s1170, %s1159
        $region72: #{tpu_custom_call.1} parent=51 // pred_fallthru
          _
      $region52: #{tpu_custom_call.1} parent=5 // pred_fallthru
        _
      %p1176 = scmp.le.s32.totalorder 2, %s19
      // Predicated region
      $region73: #{tpu_custom_call.1} parent=5 // pred_check
        %p1177 = pneg %p1176
      $region74: #{tpu_custom_call.1} parent=5 // pred_check_branch
        %1179 = sbr.rel (%p1177) target = $region76
      $region75: #{tpu_custom_call.1} parent=5 // pred_region
        %s1180 = ssub.s32 %s19, 2
        // Predicated region
        $region77: #{tpu_custom_call.1} parent=75 // pred_check
          %p1181 = pneg %p237
        $region78: #{tpu_custom_call.1} parent=75 // pred_check_branch
          %1183 = sbr.rel (%p1181) target = $region80
        $region79: #{tpu_custom_call.1} parent=75 // pred_region
          %s1184 = sand.u32 %s222, 1
          %s1185 = scalar_lea.sflag [#allocation5], %s1184
          %s1186 = sand.u32 %s222, 1
          %s1187 = smul.addr %s1186, 8
          %s1188 = scalar_lea.vmem [#allocation8], %s1187
          %1189 = dma.done %s1185, 128
        $region80: #{tpu_custom_call.1} parent=75 // pred_fallthru
          _
      $region76: #{tpu_custom_call.1} parent=5 // pred_fallthru
        _
    $region6: #{tpu_custom_call.1} parent=1 // loop_footer
      %s23 = sadd.s32 1, %s19
    $region7: #{tpu_custom_call.1} parent=1 // loop_footer_branch
      %18 = sbr.rel target = $region3
    $region8: #{tpu_custom_call.1} parent=1 // loop_exit
      _
    %1190 = vsyncpa [#allocation4], 1
    %s1191 = scalar_lea.sflag [#allocation4], 1
    %1192 = vsyncpa %s1191, 1
    %1193 = vsyncpa [#allocation7], 1
    %1194 = vsyncpa [#allocation5], 1
    %s1195 = scalar_lea.sflag [#allocation5], 1
    %1196 = vsyncpa %s1195, 1

</llo_original>
